<compile_context>
chip_gen: v5e
topology: v5e:2x2
jax: 0.10.0
libtpu: 0.0.40
codegen_flags: <defaults>
</compile_context>

<pallas_src>
import functools

import jax
import jax.numpy as jnp
from jax.experimental import pallas as pl
from jax.experimental.pallas import tpu as pltpu

PAD = 128      # lane-dense width for all hidden/output tiles
H3_OFF = 64    # lane offset of h_3 inside the packed output slab


def mlp_kernel(x_ref,
               w0_ref, b0_ref, w1_ref, b1_ref, w2_ref, b2_ref,
               w3_ref, b3_ref, w4_ref, b4_ref,
               out_ref):
    def layer(h_bf16, w_ref, b_ref, relu):
        acc = jnp.dot(h_bf16, w_ref[...], preferred_element_type=jnp.float32)
        acc = acc + b_ref[...]                 # f32 bias add on the VPU
        if relu:
            acc = jnp.maximum(acc, 0.0)
        return acc

    h = x_ref[...].astype(jnp.bfloat16)                       # (TM, 64) bf16
    h0 = layer(h, w0_ref, b0_ref, True)                       # (TM, 128) f32
    h1 = layer(h0.astype(jnp.bfloat16), w1_ref, b1_ref, True)
    h2 = layer(h1.astype(jnp.bfloat16), w2_ref, b2_ref, True)
    h3 = layer(h2.astype(jnp.bfloat16), w3_ref, b3_ref, True)
    # Augmented final matmul: lanes [0, out_dim) = output_fc(h3),
    # lanes [64, 64+12) = bf16 passthrough of h3 (identity columns in w4_ref).
    packed = layer(h3.astype(jnp.bfloat16), w4_ref, b4_ref, False)
    out_ref[...] = packed.astype(out_ref.dtype)               # one full 128-lane store


def _round_up(n, m):
    return (n + m - 1) // m * m


def _pad_w(w, rows, cols):
    # [in, out] -> zero-padded [rows, cols], bf16.
    return jnp.pad(w.astype(jnp.bfloat16),
                   ((0, rows - w.shape[0]), (0, cols - w.shape[1])))


def _pad_b(b):
    # [out] -> zero-padded [1, 128], f32.
    return jnp.pad(b.astype(jnp.float32), (0, PAD - b.shape[0])).reshape(1, PAD)


@functools.partial(jax.jit, static_argnames=("tm",))
def mlp_forward(x, params, *, tm=2048):
    """x: [batch, ...] (flattened inside), params: list of (w[in,out], b[out])."""
    batch = x.shape[0]
    x2d = x.reshape(batch, -1).astype(jnp.float32)
    in_dim = x2d.shape[1]

    (w0, b0), (w1, b1), (w2, b2), (w3, b3), (w4, b4) = params
    out_dim = w4.shape[1]
    h3_dim = w4.shape[0]
    assert in_dim == w0.shape[0]
    assert max(w0.shape[1], w1.shape[1], w2.shape[1], w3.shape[1]) <= PAD
    assert out_dim <= H3_OFF and H3_OFF + h3_dim <= PAD  # packing is valid

    # --- batch tiling: minimal (sublane) padding, >=4 grid steps when possible.
    batch_pad8 = _round_up(batch, 8)
    tm_cap = max(8, _round_up(pl.cdiv(batch_pad8, 4), 8))
    tm_eff = max(8, min(_round_up(tm, 8), tm_cap))
    nblk = pl.cdiv(batch_pad8, tm_eff)          # ragged final block OK

    xp = jnp.pad(x2d, ((0, batch_pad8 - batch), (0, 0)))   # no lane padding

    # --- weights: hidden layers padded to 128 lanes (zero pad keeps results
    # exact: padded bias lanes are 0, relu(0)=0, padded weight rows hit zeros).
    w0p = _pad_w(w0, in_dim, PAD)
    w1p = _pad_w(w1, PAD, PAD)
    w2p = _pad_w(w2, PAD, PAD)
    w3p = _pad_w(w3, PAD, PAD)
    # Augmented last-layer weight: [ w4 in cols 0..out_dim | identity rows
    # 0..h3_dim-1 -> cols 64..64+h3_dim ]; all other entries (incl. the padded
    # h3 input rows 12..127) are exactly zero, so padded lanes stay zero.
    w4p = jnp.zeros((PAD, PAD), jnp.float32)
    w4p = w4p.at[:h3_dim, :out_dim].set(w4.astype(jnp.float32))
    w4p = w4p.at[jnp.arange(h3_dim), H3_OFF + jnp.arange(h3_dim)].set(1.0)
    w4p = w4p.astype(jnp.bfloat16)
    # Bias for the augmented layer: b4 in lanes 0..out_dim, zeros elsewhere
    # (in particular the h3 passthrough lanes 64..75 stay bias-free).
    b4p = _pad_b(b4)

    args = [xp,
            w0p, _pad_b(b0),
            w1p, _pad_b(b1),
            w2p, _pad_b(b2),
            w3p, _pad_b(b3),
            w4p, b4p]

    x_spec = pl.BlockSpec((tm_eff, in_dim), lambda i: (i, 0))
    w0_spec = pl.BlockSpec((in_dim, PAD), lambda i: (0, 0))   # resident in VMEM
    w_spec = pl.BlockSpec((PAD, PAD), lambda i: (0, 0))       # resident in VMEM
    b_spec = pl.BlockSpec((1, PAD), lambda i: (0, 0))         # resident in VMEM
    o_spec = pl.BlockSpec((tm_eff, PAD), lambda i: (i, 0))

    cost = pl.CostEstimate(
        flops=2 * batch_pad8 * (in_dim * PAD + 4 * PAD * PAD),
        transcendentals=0,
        bytes_accessed=(batch_pad8 * in_dim * 4          # x (f32, 64 lanes)
                        + in_dim * PAD * 2               # w0 (bf16)
                        + 4 * PAD * PAD * 2              # w1..w4 (bf16)
                        + 5 * PAD * 4                    # biases (f32)
                        + batch_pad8 * PAD * 2),         # packed output (bf16)
    )

    out_pad = pl.pallas_call(
        mlp_kernel,
        out_shape=jax.ShapeDtypeStruct((batch_pad8, PAD), jnp.bfloat16),
        grid=(nblk,),
        in_specs=[x_spec,
                  w0_spec, b_spec, w_spec, b_spec, w_spec, b_spec,
                  w_spec, b_spec, w_spec, b_spec],
        out_specs=o_spec,
        compiler_params=pltpu.CompilerParams(
            dimension_semantics=("parallel",),
            vmem_limit_bytes=32 * 1024 * 1024),
        cost_estimate=cost,
    )(*args)

    # Slice both logical outputs out of the packed slab; return f32 views to
    # keep the module's external dtype contract.
    y_pred = out_pad[:batch, :out_dim].astype(jnp.float32)
    h_3 = out_pad[:batch, H3_OFF:H3_OFF + h3_dim].astype(jnp.float32)
    return y_pred, h_3


def init_mlp_params(key, input_dim, output_dim):
    """Deterministic init mimicking nn.Linear default (uniform +-1/sqrt(fan_in)).
    Weights stored [in, out]."""
    dims = [input_dim, 24, 20, 16, 12, output_dim]
    params = []
    for i in range(5):
        fan_in, fan_out = dims[i], dims[i + 1]
        key, kw, kb = jax.random.split(key, 3)
        bound = 1.0 / (fan_in ** 0.5)
        w = jax.random.uniform(kw, (fan_in, fan_out), jnp.float32, -bound, bound)
        b = jax.random.uniform(kb, (fan_out,), jnp.float32, -bound, bound)
        params.append((w, b))
    return params


if __name__ == "__main__":
    key = jax.random.PRNGKey(0)
    kx, kp = jax.random.split(key)

    # Small example: batch=32, input flattens to 64 features, 10 output classes.
    batch, input_dim, output_dim = 32, 64, 10
    x = jax.random.normal(kx, (batch, 4, 4, 4), jnp.float32)  # 4*4*4 = 64

    params = init_mlp_params(kp, input_dim, output_dim)

    # Default tm -> auto-capped to tm_eff=8, giving a 4-step pipelined grid.
    y_pred, h_3 = mlp_forward(x, params)
    jax.block_until_ready(y_pred)
    jax.block_until_ready(h_3)

    # Pure f32 reference (module semantics).
    def ref_f32(x, params):
        h = x.reshape(x.shape[0], -1)
        h_prev = h
        for i, (w, b) in enumerate(params):
            h_new = h @ w + b
            if i < 4:
                h_new = jnp.maximum(h_new, 0.0)
            h_prev, h = h, h_new
        return h, h_prev  # (y_pred, h_3)

    # bf16-mimic reference (bf16 operands, f32 accumulation, bf16 recast
    # between layers) -- matches the kernel arithmetic tightly.
    def ref_bf16(x, params):
        acc = x.reshape(x.shape[0], -1).astype(jnp.float32)
        outs = []
        for i, (w, b) in enumerate(params):
            lhs = acc.astype(jnp.bfloat16).astype(jnp.float32)
            rhs = w.astype(jnp.bfloat16).astype(jnp.float32)
            acc = jnp.dot(lhs, rhs, precision=jax.lax.Precision.HIGHEST) + b
            if i < 4:
                acc = jnp.maximum(acc, 0.0)
            outs.append(acc)
        return outs[-1], outs[-2]  # (y_pred, h_3)

    y_ref32, h3_ref32 = ref_f32(x, params)
    y_refbf, h3_refbf = ref_bf16(x, params)

    assert y_pred.shape == (batch, output_dim) and h_3.shape == (batch, 12)
    assert jnp.allclose(y_pred, y_refbf, atol=1e-2, rtol=1e-2)
    assert jnp.allclose(h_3, h3_refbf, atol=1e-2, rtol=1e-2)
    assert jnp.allclose(y_pred, y_ref32, atol=5e-2, rtol=5e-2)
    assert jnp.allclose(h_3, h3_ref32, atol=5e-2, rtol=5e-2)

    print("KERNEL_OK")
</pallas_src>

<mosaic_0001>
module attributes {stable_mosaic.version = 11 : i64} {
  func.func @mlp_kernel(%arg0: i32, %arg1: memref<8x64xf32, #tpu.memory_space<vmem>>, %arg2: memref<64x128xbf16, #tpu.memory_space<vmem>>, %arg3: memref<1x128xf32, #tpu.memory_space<vmem>>, %arg4: memref<128x128xbf16, #tpu.memory_space<vmem>>, %arg5: memref<1x128xf32, #tpu.memory_space<vmem>>, %arg6: memref<128x128xbf16, #tpu.memory_space<vmem>>, %arg7: memref<1x128xf32, #tpu.memory_space<vmem>>, %arg8: memref<128x128xbf16, #tpu.memory_space<vmem>>, %arg9: memref<1x128xf32, #tpu.memory_space<vmem>>, %arg10: memref<128x128xbf16, #tpu.memory_space<vmem>>, %arg11: memref<1x128xf32, #tpu.memory_space<vmem>>, %arg12: memref<8x128xbf16, #tpu.memory_space<vmem>>) attributes {dimension_semantics = [#tpu.dimension_semantics<parallel>], iteration_bounds = array<i64: 4>, scalar_prefetch = 0 : i64, scratch_operands = 0 : i64, tpu.core_type = #tpu.core_type<tc>, window_params = [{transform_indices = @transform_0, window_bounds = array<i64: 8, 64>}, {pipeline_mode = #tpu.pipeline_mode<synchronous>, transform_indices = @transform_1, window_bounds = array<i64: 64, 128>}, {pipeline_mode = #tpu.pipeline_mode<synchronous>, transform_indices = @transform_2, window_bounds = array<i64: 1, 128>}, {pipeline_mode = #tpu.pipeline_mode<synchronous>, transform_indices = @transform_3, window_bounds = array<i64: 128, 128>}, {pipeline_mode = #tpu.pipeline_mode<synchronous>, transform_indices = @transform_4, window_bounds = array<i64: 1, 128>}, {pipeline_mode = #tpu.pipeline_mode<synchronous>, transform_indices = @transform_5, window_bounds = array<i64: 128, 128>}, {pipeline_mode = #tpu.pipeline_mode<synchronous>, transform_indices = @transform_6, window_bounds = array<i64: 1, 128>}, {pipeline_mode = #tpu.pipeline_mode<synchronous>, transform_indices = @transform_7, window_bounds = array<i64: 128, 128>}, {pipeline_mode = #tpu.pipeline_mode<synchronous>, transform_indices = @transform_8, window_bounds = array<i64: 1, 128>}, {pipeline_mode = #tpu.pipeline_mode<synchronous>, transform_indices = @transform_9, window_bounds = array<i64: 128, 128>}, {pipeline_mode = #tpu.pipeline_mode<synchronous>, transform_indices = @transform_10, window_bounds = array<i64: 1, 128>}, {transform_indices = @transform_11, window_bounds = array<i64: 8, 128>}]} {
    %c0 = arith.constant 0 : index
    %c0_0 = arith.constant 0 : index
    %0 = vector.load %arg1[%c0, %c0_0] : memref<8x64xf32, #tpu.memory_space<vmem>>, vector<8x64xf32>
    %1 = arith.truncf %0 : vector<8x64xf32> to vector<8x64xbf16>
    %c0_1 = arith.constant 0 : index
    %c0_2 = arith.constant 0 : index
    %2 = vector.load %arg2[%c0_1, %c0_2] : memref<64x128xbf16, #tpu.memory_space<vmem>>, vector<64x128xbf16>
    %cst = arith.constant dense<0.000000e+00> : vector<8x128xf32>
    %3 = tpu.matmul %1, %2, %cst {dimension_numbers = #tpu.dot_dimension_numbers<[1], [0], [0], [1], [0, 0, 1, 1], [], []>} : vector<8x64xbf16>, vector<64x128xbf16>, vector<8x128xf32> -> vector<8x128xf32>
    %c0_3 = arith.constant 0 : index
    %c0_4 = arith.constant 0 : index
    %4 = vector.load %arg3[%c0_3, %c0_4] : memref<1x128xf32, #tpu.memory_space<vmem>>, vector<1x128xf32>
    %5 = vector.broadcast %4 : vector<1x128xf32> to vector<8x128xf32>
    %6 = arith.addf %3, %5 : vector<8x128xf32>
    %cst_5 = arith.constant 0.000000e+00 : f32
    %7 = vector.broadcast %cst_5 : f32 to vector<8x128xf32>
    %8 = arith.maximumf %6, %7 : vector<8x128xf32>
    %9 = arith.truncf %8 : vector<8x128xf32> to vector<8x128xbf16>
    %c0_6 = arith.constant 0 : index
    %c0_7 = arith.constant 0 : index
    %10 = vector.load %arg4[%c0_6, %c0_7] : memref<128x128xbf16, #tpu.memory_space<vmem>>, vector<128x128xbf16>
    %cst_8 = arith.constant dense<0.000000e+00> : vector<8x128xf32>
    %11 = tpu.matmul %9, %10, %cst_8 {dimension_numbers = #tpu.dot_dimension_numbers<[1], [0], [0], [1], [0, 0, 1, 1], [], []>} : vector<8x128xbf16>, vector<128x128xbf16>, vector<8x128xf32> -> vector<8x128xf32>
    %c0_9 = arith.constant 0 : index
    %c0_10 = arith.constant 0 : index
    %12 = vector.load %arg5[%c0_9, %c0_10] : memref<1x128xf32, #tpu.memory_space<vmem>>, vector<1x128xf32>
    %13 = vector.broadcast %12 : vector<1x128xf32> to vector<8x128xf32>
    %14 = arith.addf %11, %13 : vector<8x128xf32>
    %cst_11 = arith.constant 0.000000e+00 : f32
    %15 = vector.broadcast %cst_11 : f32 to vector<8x128xf32>
    %16 = arith.maximumf %14, %15 : vector<8x128xf32>
    %17 = arith.truncf %16 : vector<8x128xf32> to vector<8x128xbf16>
    %c0_12 = arith.constant 0 : index
    %c0_13 = arith.constant 0 : index
    %18 = vector.load %arg6[%c0_12, %c0_13] : memref<128x128xbf16, #tpu.memory_space<vmem>>, vector<128x128xbf16>
    %cst_14 = arith.constant dense<0.000000e+00> : vector<8x128xf32>
    %19 = tpu.matmul %17, %18, %cst_14 {dimension_numbers = #tpu.dot_dimension_numbers<[1], [0], [0], [1], [0, 0, 1, 1], [], []>} : vector<8x128xbf16>, vector<128x128xbf16>, vector<8x128xf32> -> vector<8x128xf32>
    %c0_15 = arith.constant 0 : index
    %c0_16 = arith.constant 0 : index
    %20 = vector.load %arg7[%c0_15, %c0_16] : memref<1x128xf32, #tpu.memory_space<vmem>>, vector<1x128xf32>
    %21 = vector.broadcast %20 : vector<1x128xf32> to vector<8x128xf32>
    %22 = arith.addf %19, %21 : vector<8x128xf32>
    %cst_17 = arith.constant 0.000000e+00 : f32
    %23 = vector.broadcast %cst_17 : f32 to vector<8x128xf32>
    %24 = arith.maximumf %22, %23 : vector<8x128xf32>
    %25 = arith.truncf %24 : vector<8x128xf32> to vector<8x128xbf16>
    %c0_18 = arith.constant 0 : index
    %c0_19 = arith.constant 0 : index
    %26 = vector.load %arg8[%c0_18, %c0_19] : memref<128x128xbf16, #tpu.memory_space<vmem>>, vector<128x128xbf16>
    %cst_20 = arith.constant dense<0.000000e+00> : vector<8x128xf32>
    %27 = tpu.matmul %25, %26, %cst_20 {dimension_numbers = #tpu.dot_dimension_numbers<[1], [0], [0], [1], [0, 0, 1, 1], [], []>} : vector<8x128xbf16>, vector<128x128xbf16>, vector<8x128xf32> -> vector<8x128xf32>
    %c0_21 = arith.constant 0 : index
    %c0_22 = arith.constant 0 : index
    %28 = vector.load %arg9[%c0_21, %c0_22] : memref<1x128xf32, #tpu.memory_space<vmem>>, vector<1x128xf32>
    %29 = vector.broadcast %28 : vector<1x128xf32> to vector<8x128xf32>
    %30 = arith.addf %27, %29 : vector<8x128xf32>
    %cst_23 = arith.constant 0.000000e+00 : f32
    %31 = vector.broadcast %cst_23 : f32 to vector<8x128xf32>
    %32 = arith.maximumf %30, %31 : vector<8x128xf32>
    %33 = arith.truncf %32 : vector<8x128xf32> to vector<8x128xbf16>
    %c0_24 = arith.constant 0 : index
    %c0_25 = arith.constant 0 : index
    %34 = vector.load %arg10[%c0_24, %c0_25] : memref<128x128xbf16, #tpu.memory_space<vmem>>, vector<128x128xbf16>
    %cst_26 = arith.constant dense<0.000000e+00> : vector<8x128xf32>
    %35 = tpu.matmul %33, %34, %cst_26 {dimension_numbers = #tpu.dot_dimension_numbers<[1], [0], [0], [1], [0, 0, 1, 1], [], []>} : vector<8x128xbf16>, vector<128x128xbf16>, vector<8x128xf32> -> vector<8x128xf32>
    %c0_27 = arith.constant 0 : index
    %c0_28 = arith.constant 0 : index
    %36 = vector.load %arg11[%c0_27, %c0_28] : memref<1x128xf32, #tpu.memory_space<vmem>>, vector<1x128xf32>
    %37 = vector.broadcast %36 : vector<1x128xf32> to vector<8x128xf32>
    %38 = arith.addf %35, %37 : vector<8x128xf32>
    %39 = arith.truncf %38 : vector<8x128xf32> to vector<8x128xbf16>
    %c0_29 = arith.constant 0 : index
    %c0_30 = arith.constant 0 : index
    %40 = vector.load %arg12[%c0_29, %c0_30] : memref<8x128xbf16, #tpu.memory_space<vmem>>, vector<8x128xbf16>
    tpu.vector_store %arg12[%c0_29, %c0_30], %39 {strides = array<i32>} : memref<8x128xbf16, #tpu.memory_space<vmem>>, vector<8x128xbf16>,
    return
  }
  func.func @transform_0(%arg0: i32) -> (i32, i32) {
    %c0_i32 = arith.constant 0 : i32
    %c0_i32_0 = arith.constant 0 : i32
    return %arg0, %c0_i32 : i32, i32
  }
  func.func @transform_1(%arg0: i32) -> (i32, i32) {
    %c0_i32 = arith.constant 0 : i32
    %c0_i32_0 = arith.constant 0 : i32
    %c0_i32_1 = arith.constant 0 : i32
    return %c0_i32, %c0_i32_0 : i32, i32
  }
  func.func @transform_2(%arg0: i32) -> (i32, i32) {
    %c0_i32 = arith.constant 0 : i32
    %c0_i32_0 = arith.constant 0 : i32
    %c0_i32_1 = arith.constant 0 : i32
    return %c0_i32, %c0_i32_0 : i32, i32
  }
  func.func @transform_3(%arg0: i32) -> (i32, i32) {
    %c0_i32 = arith.constant 0 : i32
    %c0_i32_0 = arith.constant 0 : i32
    %c0_i32_1 = arith.constant 0 : i32
    return %c0_i32, %c0_i32_0 : i32, i32
  }
  func.func @transform_4(%arg0: i32) -> (i32, i32) {
    %c0_i32 = arith.constant 0 : i32
    %c0_i32_0 = arith.constant 0 : i32
    %c0_i32_1 = arith.constant 0 : i32
    return %c0_i32, %c0_i32_0 : i32, i32
  }
  func.func @transform_5(%arg0: i32) -> (i32, i32) {
    %c0_i32 = arith.constant 0 : i32
    %c0_i32_0 = arith.constant 0 : i32
    %c0_i32_1 = arith.constant 0 : i32
    return %c0_i32, %c0_i32_0 : i32, i32
  }
  func.func @transform_6(%arg0: i32) -> (i32, i32) {
    %c0_i32 = arith.constant 0 : i32
    %c0_i32_0 = arith.constant 0 : i32
    %c0_i32_1 = arith.constant 0 : i32
    return %c0_i32, %c0_i32_0 : i32, i32
  }
  func.func @transform_7(%arg0: i32) -> (i32, i32) {
    %c0_i32 = arith.constant 0 : i32
    %c0_i32_0 = arith.constant 0 : i32
    %c0_i32_1 = arith.constant 0 : i32
    return %c0_i32, %c0_i32_0 : i32, i32
  }
  func.func @transform_8(%arg0: i32) -> (i32, i32) {
    %c0_i32 = arith.constant 0 : i32
    %c0_i32_0 = arith.constant 0 : i32
    %c0_i32_1 = arith.constant 0 : i32
    return %c0_i32, %c0_i32_0 : i32, i32
  }
  func.func @transform_9(%arg0: i32) -> (i32, i32) {
    %c0_i32 = arith.constant 0 : i32
    %c0_i32_0 = arith.constant 0 : i32
    %c0_i32_1 = arith.constant 0 : i32
    return %c0_i32, %c0_i32_0 : i32, i32
  }
  func.func @transform_10(%arg0: i32) -> (i32, i32) {
    %c0_i32 = arith.constant 0 : i32
    %c0_i32_0 = arith.constant 0 : i32
    %c0_i32_1 = arith.constant 0 : i32
    return %c0_i32, %c0_i32_0 : i32, i32
  }
  func.func @transform_11(%arg0: i32) -> (i32, i32) {
    %c0_i32 = arith.constant 0 : i32
    %c0_i32_0 = arith.constant 0 : i32
    return %arg0, %c0_i32 : i32, i32
  }
}

</mosaic_0001>

<llo_original>
// kernel: mlp_forward.1
$region0: #{mlp_forward.1}
  #allocation0 [shape = 'u32[]', space=smem, size = 0x4, offset = 0x4, fixed_abs, tag = 'smem constant byte address 0x4 - core index']
  #allocation1 [shape = 'u32[72,128]{1,0:T(1,128)}', space=vmem, size = 0x9000, scoped, tag = 'internal scratch']
  %s0 = inlined_call_operand.vmem [shape: f32[32,64], index: 0, kind: input, shape index: {}]
  %s1 = inlined_call_operand.vmem [shape: bf16[64,128], index: 1, kind: input, shape index: {}]
  %s2 = inlined_call_operand.vmem [shape: f32[1,128], index: 2, kind: input, shape index: {}]
  %s3 = inlined_call_operand.vmem [shape: bf16[128,128], index: 3, kind: input, shape index: {}]
  %s4 = inlined_call_operand.vmem [shape: f32[1,128], index: 4, kind: input, shape index: {}]
  %s5 = inlined_call_operand.vmem [shape: bf16[128,128], index: 5, kind: input, shape index: {}]
  %s6 = inlined_call_operand.vmem [shape: f32[1,128], index: 6, kind: input, shape index: {}]
  %s7 = inlined_call_operand.vmem [shape: bf16[128,128], index: 7, kind: input, shape index: {}]
  %s8 = inlined_call_operand.vmem [shape: f32[1,128], index: 8, kind: input, shape index: {}]
  %s9 = inlined_call_operand.vmem [shape: bf16[128,128], index: 9, kind: input, shape index: {}]
  %s10 = inlined_call_operand.vmem [shape: f32[1,128], index: 10, kind: input, shape index: {}]
  %s11 = inlined_call_operand.vmem [shape: bf16[32,128], index: 11, kind: output, shape index: {}]
  %s12 = sld [smem:[#allocation0]]
  $region77: #{mlp_forward.1} parent=0
    _
  %s14 = ssub.s32 1, %s12
  %s15 = scalar_select 0, %s14, %s12
  loop: start=0, step=1, limit=6
  $region2: #{mlp_forward.1} parent=0 // loop_pre_header
    _
  $region3: #{mlp_forward.1} parent=0 // loop_header
    %s17 = sphi 0, %s21
    %p18 = scmp.ge.s32.totalorder %s17, 6
    %s27 = sphi 0, %s29
    %s30 = sphi 0, %s27
    %s31 = sphi 0, %s30
    %s47 = sphi 0, %s31
    %s51 = sphi 0, %s51
    %s53 = sphi 0, %s51
    %s54 = sphi 0, %s53
    %s68 = sphi 0, %s54
    %s72 = sphi 0, %s72
    %s74 = sphi 0, %s72
    %s75 = sphi 0, %s74
    %s89 = sphi 0, %s75
    %s93 = sphi 0, %s93
    %s95 = sphi 0, %s93
    %s96 = sphi 0, %s95
    %s110 = sphi 0, %s96
    %s114 = sphi 0, %s114
    %s116 = sphi 0, %s114
    %s117 = sphi 0, %s116
    %s131 = sphi 0, %s117
    %s135 = sphi 0, %s135
    %s137 = sphi 0, %s135
    %s138 = sphi 0, %s137
    %s152 = sphi 0, %s138
    %s156 = sphi 0, %s156
    %s158 = sphi 0, %s156
    %s159 = sphi 0, %s158
    %s173 = sphi 0, %s159
    %s177 = sphi 0, %s177
    %s179 = sphi 0, %s177
    %s180 = sphi 0, %s179
    %s194 = sphi 0, %s180
    %s198 = sphi 0, %s198
    %s200 = sphi 0, %s198
    %s201 = sphi 0, %s200
    %s215 = sphi 0, %s201
    %s219 = sphi 0, %s219
    %s221 = sphi 0, %s219
    %s222 = sphi 0, %s221
    %s236 = sphi 0, %s222
    %s240 = sphi 0, %s240
    %s242 = sphi 0, %s240
    %s243 = sphi 0, %s242
    %s257 = sphi 0, %s243
    %s263 = sphi 0, %s265
    %s266 = sphi 0, %s263
    %s267 = sphi 0, %s266
    %s283 = sphi 0, %s267
  $region4: #{mlp_forward.1} parent=0 // loop_header_branch
    %20 = sbr.rel (%p18) target = $region8
  $region5: #{mlp_forward.1} parent=0 // loop_body
    %s22 = ssub.s32 %s17, 1
    %s23 = ssub.s32 %s17, 2
    %s24 = sadd.s32 %s17, 1
    %s25 = ssub.s32 %s17, %s24
    %p26 = scmp.eq.s32.totalorder %s25, 0
    %s28 = sadd.s32 %s27, 1
    %s29 = scalar_select %p26, %s27, %s28
    %p32 = pneg %p26
    %p33 = scmp.eq.s32.totalorder %s17, 3
    %p34 = por %p32, %p33
    %p35 = scmp.ne.s32.totalorder %s27, %s30
    %p36 = scmp.eq.s32.totalorder %s17, 0
    %p37 = por %p35, %p36
    %p38 = scmp.ne.s32.totalorder %s27, %s30
    %p39 = scmp.eq.s32.totalorder %s22, 3
    %p40 = por %p38, %p39
    %p41 = scmp.ne.s32.totalorder %s30, %s31
    %p42 = scmp.eq.s32.totalorder %s22, 0
    %p43 = por %p41, %p42
    %p44 = scmp.ne.s32.totalorder %s30, %s31
    %p45 = scmp.eq.s32.totalorder %s23, 3
    %p46 = por %p44, %p45
    %p48 = scmp.ne.s32.totalorder %s31, %s47
    %p49 = scmp.eq.s32.totalorder %s23, 0
    %p50 = por %p48, %p49
    %s52 = sadd.s32 %s51, 1
    %p55 = scmp.eq.s32.totalorder %s17, 3
    %p56 = scmp.ne.s32.totalorder %s51, %s53
    %p57 = scmp.eq.s32.totalorder %s17, 0
    %p58 = por %p56, %p57
    %p59 = scmp.ne.s32.totalorder %s51, %s53
    %p60 = scmp.eq.s32.totalorder %s22, 3
    %p61 = por %p59, %p60
    %p62 = scmp.ne.s32.totalorder %s53, %s54
    %p63 = scmp.eq.s32.totalorder %s22, 0
    %p64 = por %p62, %p63
    %p65 = scmp.ne.s32.totalorder %s53, %s54
    %p66 = scmp.eq.s32.totalorder %s23, 3
    %p67 = por %p65, %p66
    %p69 = scmp.ne.s32.totalorder %s54, %s68
    %p70 = scmp.eq.s32.totalorder %s23, 0
    %p71 = por %p69, %p70
    %s73 = sadd.s32 %s72, 1
    %p76 = scmp.eq.s32.totalorder %s17, 3
    %p77 = scmp.ne.s32.totalorder %s72, %s74
    %p78 = scmp.eq.s32.totalorder %s17, 0
    %p79 = por %p77, %p78
    %p80 = scmp.ne.s32.totalorder %s72, %s74
    %p81 = scmp.eq.s32.totalorder %s22, 3
    %p82 = por %p80, %p81
    %p83 = scmp.ne.s32.totalorder %s74, %s75
    %p84 = scmp.eq.s32.totalorder %s22, 0
    %p85 = por %p83, %p84
    %p86 = scmp.ne.s32.totalorder %s74, %s75
    %p87 = scmp.eq.s32.totalorder %s23, 3
    %p88 = por %p86, %p87
    %p90 = scmp.ne.s32.totalorder %s75, %s89
    %p91 = scmp.eq.s32.totalorder %s23, 0
    %p92 = por %p90, %p91
    %s94 = sadd.s32 %s93, 1
    %p97 = scmp.eq.s32.totalorder %s17, 3
    %p98 = scmp.ne.s32.totalorder %s93, %s95
    %p99 = scmp.eq.s32.totalorder %s17, 0
    %p100 = por %p98, %p99
    %p101 = scmp.ne.s32.totalorder %s93, %s95
    %p102 = scmp.eq.s32.totalorder %s22, 3
    %p103 = por %p101, %p102
    %p104 = scmp.ne.s32.totalorder %s95, %s96
    %p105 = scmp.eq.s32.totalorder %s22, 0
    %p106 = por %p104, %p105
    %p107 = scmp.ne.s32.totalorder %s95, %s96
    %p108 = scmp.eq.s32.totalorder %s23, 3
    %p109 = por %p107, %p108
    %p111 = scmp.ne.s32.totalorder %s96, %s110
    %p112 = scmp.eq.s32.totalorder %s23, 0
    %p113 = por %p111, %p112
    %s115 = sadd.s32 %s114, 1
    %p118 = scmp.eq.s32.totalorder %s17, 3
    %p119 = scmp.ne.s32.totalorder %s114, %s116
    %p120 = scmp.eq.s32.totalorder %s17, 0
    %p121 = por %p119, %p120
    %p122 = scmp.ne.s32.totalorder %s114, %s116
    %p123 = scmp.eq.s32.totalorder %s22, 3
    %p124 = por %p122, %p123
    %p125 = scmp.ne.s32.totalorder %s116, %s117
    %p126 = scmp.eq.s32.totalorder %s22, 0
    %p127 = por %p125, %p126
    %p128 = scmp.ne.s32.totalorder %s116, %s117
    %p129 = scmp.eq.s32.totalorder %s23, 3
    %p130 = por %p128, %p129
    %p132 = scmp.ne.s32.totalorder %s117, %s131
    %p133 = scmp.eq.s32.totalorder %s23, 0
    %p134 = por %p132, %p133
    %s136 = sadd.s32 %s135, 1
    %p139 = scmp.eq.s32.totalorder %s17, 3
    %p140 = scmp.ne.s32.totalorder %s135, %s137
    %p141 = scmp.eq.s32.totalorder %s17, 0
    %p142 = por %p140, %p141
    %p143 = scmp.ne.s32.totalorder %s135, %s137
    %p144 = scmp.eq.s32.totalorder %s22, 3
    %p145 = por %p143, %p144
    %p146 = scmp.ne.s32.totalorder %s137, %s138
    %p147 = scmp.eq.s32.totalorder %s22, 0
    %p148 = por %p146, %p147
    %p149 = scmp.ne.s32.totalorder %s137, %s138
    %p150 = scmp.eq.s32.totalorder %s23, 3
    %p151 = por %p149, %p150
    %p153 = scmp.ne.s32.totalorder %s138, %s152
    %p154 = scmp.eq.s32.totalorder %s23, 0
    %p155 = por %p153, %p154
    %s157 = sadd.s32 %s156, 1
    %p160 = scmp.eq.s32.totalorder %s17, 3
    %p161 = scmp.ne.s32.totalorder %s156, %s158
    %p162 = scmp.eq.s32.totalorder %s17, 0
    %p163 = por %p161, %p162
    %p164 = scmp.ne.s32.totalorder %s156, %s158
    %p165 = scmp.eq.s32.totalorder %s22, 3
    %p166 = por %p164, %p165
    %p167 = scmp.ne.s32.totalorder %s158, %s159
    %p168 = scmp.eq.s32.totalorder %s22, 0
    %p169 = por %p167, %p168
    %p170 = scmp.ne.s32.totalorder %s158, %s159
    %p171 = scmp.eq.s32.totalorder %s23, 3
    %p172 = por %p170, %p171
    %p174 = scmp.ne.s32.totalorder %s159, %s173
    %p175 = scmp.eq.s32.totalorder %s23, 0
    %p176 = por %p174, %p175
    %s178 = sadd.s32 %s177, 1
    %p181 = scmp.eq.s32.totalorder %s17, 3
    %p182 = scmp.ne.s32.totalorder %s177, %s179
    %p183 = scmp.eq.s32.totalorder %s17, 0
    %p184 = por %p182, %p183
    %p185 = scmp.ne.s32.totalorder %s177, %s179
    %p186 = scmp.eq.s32.totalorder %s22, 3
    %p187 = por %p185, %p186
    %p188 = scmp.ne.s32.totalorder %s179, %s180
    %p189 = scmp.eq.s32.totalorder %s22, 0
    %p190 = por %p188, %p189
    %p191 = scmp.ne.s32.totalorder %s179, %s180
    %p192 = scmp.eq.s32.totalorder %s23, 3
    %p193 = por %p191, %p192
    %p195 = scmp.ne.s32.totalorder %s180, %s194
    %p196 = scmp.eq.s32.totalorder %s23, 0
    %p197 = por %p195, %p196
    %s199 = sadd.s32 %s198, 1
    %p202 = scmp.eq.s32.totalorder %s17, 3
    %p203 = scmp.ne.s32.totalorder %s198, %s200
    %p204 = scmp.eq.s32.totalorder %s17, 0
    %p205 = por %p203, %p204
    %p206 = scmp.ne.s32.totalorder %s198, %s200
    %p207 = scmp.eq.s32.totalorder %s22, 3
    %p208 = por %p206, %p207
    %p209 = scmp.ne.s32.totalorder %s200, %s201
    %p210 = scmp.eq.s32.totalorder %s22, 0
    %p211 = por %p209, %p210
    %p212 = scmp.ne.s32.totalorder %s200, %s201
    %p213 = scmp.eq.s32.totalorder %s23, 3
    %p214 = por %p212, %p213
    %p216 = scmp.ne.s32.totalorder %s201, %s215
    %p217 = scmp.eq.s32.totalorder %s23, 0
    %p218 = por %p216, %p217
    %s220 = sadd.s32 %s219, 1
    %p223 = scmp.eq.s32.totalorder %s17, 3
    %p224 = scmp.ne.s32.totalorder %s219, %s221
    %p225 = scmp.eq.s32.totalorder %s17, 0
    %p226 = por %p224, %p225
    %p227 = scmp.ne.s32.totalorder %s219, %s221
    %p228 = scmp.eq.s32.totalorder %s22, 3
    %p229 = por %p227, %p228
    %p230 = scmp.ne.s32.totalorder %s221, %s222
    %p231 = scmp.eq.s32.totalorder %s22, 0
    %p232 = por %p230, %p231
    %p233 = scmp.ne.s32.totalorder %s221, %s222
    %p234 = scmp.eq.s32.totalorder %s23, 3
    %p235 = por %p233, %p234
    %p237 = scmp.ne.s32.totalorder %s222, %s236
    %p238 = scmp.eq.s32.totalorder %s23, 0
    %p239 = por %p237, %p238
    %s241 = sadd.s32 %s240, 1
    %p244 = scmp.eq.s32.totalorder %s17, 3
    %p245 = scmp.ne.s32.totalorder %s240, %s242
    %p246 = scmp.eq.s32.totalorder %s17, 0
    %p247 = por %p245, %p246
    %p248 = scmp.ne.s32.totalorder %s240, %s242
    %p249 = scmp.eq.s32.totalorder %s22, 3
    %p250 = por %p248, %p249
    %p251 = scmp.ne.s32.totalorder %s242, %s243
    %p252 = scmp.eq.s32.totalorder %s22, 0
    %p253 = por %p251, %p252
    %p254 = scmp.ne.s32.totalorder %s242, %s243
    %p255 = scmp.eq.s32.totalorder %s23, 3
    %p256 = por %p254, %p255
    %p258 = scmp.ne.s32.totalorder %s243, %s257
    %p259 = scmp.eq.s32.totalorder %s23, 0
    %p260 = por %p258, %p259
    %s261 = ssub.s32 %s17, %s24
    %p262 = scmp.eq.s32.totalorder %s261, 0
    %s264 = sadd.s32 %s263, 1
    %s265 = scalar_select %p262, %s263, %s264
    %p268 = pneg %p262
    %p269 = scmp.eq.s32.totalorder %s17, 3
    %p270 = por %p268, %p269
    %p271 = scmp.ne.s32.totalorder %s263, %s266
    %p272 = scmp.eq.s32.totalorder %s17, 0
    %p273 = por %p271, %p272
    %p274 = scmp.ne.s32.totalorder %s263, %s266
    %p275 = scmp.eq.s32.totalorder %s22, 3
    %p276 = por %p274, %p275
    %p277 = scmp.ne.s32.totalorder %s266, %s267
    %p278 = scmp.eq.s32.totalorder %s22, 0
    %p279 = por %p277, %p278
    %p280 = scmp.ne.s32.totalorder %s266, %s267
    %p281 = scmp.eq.s32.totalorder %s23, 3
    %p282 = por %p280, %p281
    %p284 = scmp.ne.s32.totalorder %s267, %s283
    %p285 = scmp.eq.s32.totalorder %s23, 0
    %p286 = por %p284, %p285
    %p287 = scmp.le.s32.totalorder 1, %s17
    %p288 = scmp.lt.s32.totalorder %s17, 5
    %p289 = pnand %p287, %p288
    %p290 = pneg %p289
    // Predicated region
    $region9: #{mlp_forward.1} parent=5 // pred_check
      _
    $region10: #{mlp_forward.1} parent=5 // pred_check_branch
      %292 = sbr.rel (%p289) target = $region12
    $region11: #{mlp_forward.1} parent=5 // pred_region
      %s293 = ssub.s32 %s17, 1
      // Predicated region
      $region13: #{mlp_forward.1} parent=11 // pred_check
        %p294 = pneg %p64
      $region14: #{mlp_forward.1} parent=11 // pred_check_branch
        %296 = sbr.rel (%p294) target = $region16
      $region15: #{mlp_forward.1} parent=11 // pred_region
        _
      $region16: #{mlp_forward.1} parent=11 // pred_fallthru
        _
      // Predicated region
      $region17: #{mlp_forward.1} parent=11 // pred_check
        %p297 = pneg %p85
      $region18: #{mlp_forward.1} parent=11 // pred_check_branch
        %299 = sbr.rel (%p297) target = $region20
      $region19: #{mlp_forward.1} parent=11 // pred_region
        _
      $region20: #{mlp_forward.1} parent=11 // pred_fallthru
        _
      // Predicated region
      $region21: #{mlp_forward.1} parent=11 // pred_check
        %p300 = pneg %p106
      $region22: #{mlp_forward.1} parent=11 // pred_check_branch
        %302 = sbr.rel (%p300) target = $region24
      $region23: #{mlp_forward.1} parent=11 // pred_region
        _
      $region24: #{mlp_forward.1} parent=11 // pred_fallthru
        _
      // Predicated region
      $region25: #{mlp_forward.1} parent=11 // pred_check
        %p303 = pneg %p127
      $region26: #{mlp_forward.1} parent=11 // pred_check_branch
        %305 = sbr.rel (%p303) target = $region28
      $region27: #{mlp_forward.1} parent=11 // pred_region
        _
      $region28: #{mlp_forward.1} parent=11 // pred_fallthru
        _
      // Predicated region
      $region29: #{mlp_forward.1} parent=11 // pred_check
        %p306 = pneg %p148
      $region30: #{mlp_forward.1} parent=11 // pred_check_branch
        %308 = sbr.rel (%p306) target = $region32
      $region31: #{mlp_forward.1} parent=11 // pred_region
        _
      $region32: #{mlp_forward.1} parent=11 // pred_fallthru
        _
      // Predicated region
      $region33: #{mlp_forward.1} parent=11 // pred_check
        %p309 = pneg %p169
      $region34: #{mlp_forward.1} parent=11 // pred_check_branch
        %311 = sbr.rel (%p309) target = $region36
      $region35: #{mlp_forward.1} parent=11 // pred_region
        _
      $region36: #{mlp_forward.1} parent=11 // pred_fallthru
        _
      // Predicated region
      $region37: #{mlp_forward.1} parent=11 // pred_check
        %p312 = pneg %p190
      $region38: #{mlp_forward.1} parent=11 // pred_check_branch
        %314 = sbr.rel (%p312) target = $region40
      $region39: #{mlp_forward.1} parent=11 // pred_region
        _
      $region40: #{mlp_forward.1} parent=11 // pred_fallthru
        _
      // Predicated region
      $region41: #{mlp_forward.1} parent=11 // pred_check
        %p315 = pneg %p211
      $region42: #{mlp_forward.1} parent=11 // pred_check_branch
        %317 = sbr.rel (%p315) target = $region44
      $region43: #{mlp_forward.1} parent=11 // pred_region
        _
      $region44: #{mlp_forward.1} parent=11 // pred_fallthru
        _
      // Predicated region
      $region45: #{mlp_forward.1} parent=11 // pred_check
        %p318 = pneg %p232
      $region46: #{mlp_forward.1} parent=11 // pred_check_branch
        %320 = sbr.rel (%p318) target = $region48
      $region47: #{mlp_forward.1} parent=11 // pred_region
        _
      $region48: #{mlp_forward.1} parent=11 // pred_fallthru
        _
      // Predicated region
      $region49: #{mlp_forward.1} parent=11 // pred_check
        %p321 = pneg %p253
      $region50: #{mlp_forward.1} parent=11 // pred_check_branch
        %323 = sbr.rel (%p321) target = $region52
      $region51: #{mlp_forward.1} parent=11 // pred_region
        _
      $region52: #{mlp_forward.1} parent=11 // pred_fallthru
        _
    $region12: #{mlp_forward.1} parent=5 // pred_fallthru
      _
    %p324 = scmp.lt.s32.totalorder %s17, 4
    // Predicated region
    $region53: #{mlp_forward.1} parent=5 // pred_check
      %p325 = pneg %p324
    $region54: #{mlp_forward.1} parent=5 // pred_check_branch
      %327 = sbr.rel (%p325) target = $region56
    $region55: #{mlp_forward.1} parent=5 // pred_region
      // Predicated region
      $region57: #{mlp_forward.1} parent=55 // pred_check
        %p328 = pneg %p37
      $region58: #{mlp_forward.1} parent=55 // pred_check_branch
        %330 = sbr.rel (%p328) target = $region60
      $region59: #{mlp_forward.1} parent=55 // pred_region
        %p331 = scmp.lt.s32.totalorder %s17, 3
        %s332 = scalar_select %p331, %s17, 3
        %s333 = smul.addr %s332, 8
        %s334 = scalar_lea.vmem %s0, %s333
      $region60: #{mlp_forward.1} parent=55 // pred_fallthru
        _
    $region56: #{mlp_forward.1} parent=5 // pred_fallthru
      _
    %p335 = scmp.le.s32.totalorder 1, %s17
    %p336 = scmp.lt.s32.totalorder %s17, 5
    %p337 = pnand %p335, %p336
    %p338 = pneg %p337
    // Predicated region
    $region61: #{mlp_forward.1} parent=5 // pred_check
      _
    $region62: #{mlp_forward.1} parent=5 // pred_check_branch
      %340 = sbr.rel (%p337) target = $region64
    $region63: #{mlp_forward.1} parent=5 // pred_region
      %s341 = ssub.s32 %s17, 1
      %p342 = scmp.lt.s32.totalorder %s22, 3
      %s343 = scalar_select %p342, %s22, 3
      %s344 = smul.addr %s343, 8
      %s345 = scalar_lea.vmem %s0, %s344
      %p346 = pneg %p43
      %p347 = pneg %p40
      %p348 = pneg %p64
      %p349 = pneg %p61
      %p350 = pneg %p85
      %p351 = pneg %p82
      %p352 = pneg %p106
      %p353 = pneg %p103
      %p354 = pneg %p127
      %p355 = pneg %p124
      %p356 = pneg %p148
      %p357 = pneg %p145
      %p358 = pneg %p169
      %p359 = pneg %p166
      %p360 = pneg %p190
      %p361 = pneg %p187
      %p362 = pneg %p211
      %p363 = pneg %p208
      %p364 = pneg %p232
      %p365 = pneg %p229
      %p366 = pneg %p253
      %p367 = pneg %p250
      %p368 = pneg %p279
      %p369 = pneg %p276
      %p370 = scmp.lt.s32.totalorder %s22, 3
      %s371 = scalar_select %p370, %s22, 3
      %s372 = smul.addr %s371, 4
      %s373 = scalar_lea.vmem %s11, %s372
      %p374 = scmp.lt.s32.totalorder %s22, 3
      %s375 = scalar_select %p374, %s22, 3
      %s376 = smul.addr %s375, 8
      %s377 = scalar_lea.vmem %s0, %s376
      %p378 = scmp.lt.s32.totalorder %s22, 3
      %s379 = scalar_select %p378, %s22, 3
      %s380 = smul.addr %s379, 4
      %s381 = scalar_lea.vmem %s11, %s380
      %v383 = vld [vmem:[%s377] sm:$0xff]
      %v384 = vpack.c.bf16 %v383, %v383
      %v385 = vld [vmem:[%s1] sm:$0xf]
      %v386 = vld [vmem:[%s1 + $0x4] sm:$0xf]
      %v387 = vld [vmem:[%s1 + $0x8] sm:$0xf]
      %v388 = vld [vmem:[%s1 + $0xc] sm:$0xf]
      %v389 = vld [vmem:[%s1 + $0x10] sm:$0xf]
      %v390 = vld [vmem:[%s1 + $0x14] sm:$0xf]
      %v391 = vld [vmem:[%s1 + $0x18] sm:$0xf]
      %v392 = vld [vmem:[%s1 + $0x1c] sm:$0xf]
      %v393 = vld [vmem:[%s2] sm:$0x1]
      %v395 = vperm.slane %v393, 0
      %v405 = vunpack.c.l.b16 %v385
      %v406 = vunpack.c.l.b16 %v386
      %v407 = vunpack.c.l.b16 %v387
      %v408 = vunpack.c.l.b16 %v388
      %v409 = vunpack.c.l.b16 %v389
      %v410 = vunpack.c.l.b16 %v390
      %v411 = vunpack.c.l.b16 %v391
      %v412 = vunpack.c.l.b16 %v392
      %v413 = vpack.c.b16 %v406, %v405
      %v414 = vpack.c.b16 %v408, %v407
      %v415 = vpack.c.b16 %v410, %v409
      %v416 = vpack.c.b16 %v412, %v411
      %vm421 = vcmask 523264
      %v423 = vsel %vm421, %v384, 0
      %425 = vmatpush.bf16.msra.mxu0 0
      %426 = vmatpush.bf16.msra.mxu0 0
      %427 = vmatpush.bf16.msra.mxu0 0
      %428 = vmatpush.bf16.msra.mxu0 0
      %429 = vmatpush.bf16.msra.mxu0 %v416
      %430 = vmatpush.bf16.msra.mxu0 %v415
      %431 = vmatpush.bf16.msra.mxu0 %v414
      %432 = vmatpush.bf16.msra.mxu0 %v413
      %433 = vmatmul.bf16.gmra.mxu0 %v423
      %v434 = vpop.f32.mrf.mxu0
      %v435 = vadd.f32 %v395, %v434
      %v436 = vpop.f32.mrf.mxu0
      %437 = vdwg.mxu0
      %v438 = vmax.f32 %v435, 0.0
      %v439 = vpack.c.bf16 %v438, %v438
      %v440 = vld [vmem:[%s3] sm:$0xf]
      %v441 = vld [vmem:[%s3 + $0x4] sm:$0xf]
      %v442 = vld [vmem:[%s3 + $0x8] sm:$0xf]
      %v443 = vld [vmem:[%s3 + $0xc] sm:$0xf]
      %v444 = vld [vmem:[%s3 + $0x10] sm:$0xf]
      %v445 = vld [vmem:[%s3 + $0x14] sm:$0xf]
      %v446 = vld [vmem:[%s3 + $0x18] sm:$0xf]
      %v447 = vld [vmem:[%s3 + $0x1c] sm:$0xf]
      %v448 = vld [vmem:[%s3 + $0x20] sm:$0xf]
      %v449 = vld [vmem:[%s3 + $0x24] sm:$0xf]
      %v450 = vld [vmem:[%s3 + $0x28] sm:$0xf]
      %v451 = vld [vmem:[%s3 + $0x2c] sm:$0xf]
      %v452 = vld [vmem:[%s3 + $0x30] sm:$0xf]
      %v453 = vld [vmem:[%s3 + $0x34] sm:$0xf]
      %v454 = vld [vmem:[%s3 + $0x38] sm:$0xf]
      %v455 = vld [vmem:[%s3 + $0x3c] sm:$0xf]
      %v456 = vld [vmem:[%s4] sm:$0x1]
      %v458 = vperm.slane %v456, 0
      %v476 = vunpack.c.l.b16 %v440
      %v477 = vunpack.c.l.b16 %v441
      %v478 = vunpack.c.l.b16 %v442
      %v479 = vunpack.c.l.b16 %v443
      %v480 = vunpack.c.l.b16 %v444
      %v481 = vunpack.c.l.b16 %v445
      %v482 = vunpack.c.l.b16 %v446
      %v483 = vunpack.c.l.b16 %v447
      %v484 = vunpack.c.l.b16 %v448
      %v485 = vunpack.c.l.b16 %v449
      %v486 = vunpack.c.l.b16 %v450
      %v487 = vunpack.c.l.b16 %v451
      %v488 = vunpack.c.l.b16 %v452
      %v489 = vunpack.c.l.b16 %v453
      %v490 = vunpack.c.l.b16 %v454
      %v491 = vunpack.c.l.b16 %v455
      %v492 = vpack.c.b16 %v477, %v476
      %v493 = vpack.c.b16 %v479, %v478
      %v494 = vpack.c.b16 %v481, %v480
      %v495 = vpack.c.b16 %v483, %v482
      %v496 = vpack.c.b16 %v485, %v484
      %v497 = vpack.c.b16 %v487, %v486
      %v498 = vpack.c.b16 %v489, %v488
      %v499 = vpack.c.b16 %v491, %v490
      %508 = vmatpush.bf16.msra.mxu0 %v499
      %509 = vmatpush.bf16.msra.mxu0 %v498
      %510 = vmatpush.bf16.msra.mxu0 %v497
      %511 = vmatpush.bf16.msra.mxu0 %v496
      %512 = vmatpush.bf16.msra.mxu0 %v495
      %513 = vmatpush.bf16.msra.mxu0 %v494
      %514 = vmatpush.bf16.msra.mxu0 %v493
      %515 = vmatpush.bf16.msra.mxu0 %v492
      %516 = vmatmul.bf16.gmra.mxu0 %v439
      %v517 = vpop.f32.mrf.mxu0
      %v518 = vadd.f32 %v458, %v517
      %v519 = vpop.f32.mrf.mxu0
      %520 = vdwg.mxu0
      %v521 = vmax.f32 %v518, 0.0
      %v522 = vpack.c.bf16 %v521, %v521
      %v523 = vld [vmem:[%s5] sm:$0xf]
      %v524 = vld [vmem:[%s5 + $0x4] sm:$0xf]
      %v525 = vld [vmem:[%s5 + $0x8] sm:$0xf]
      %v526 = vld [vmem:[%s5 + $0xc] sm:$0xf]
      %v527 = vld [vmem:[%s5 + $0x10] sm:$0xf]
      %v528 = vld [vmem:[%s5 + $0x14] sm:$0xf]
      %v529 = vld [vmem:[%s5 + $0x18] sm:$0xf]
      %v530 = vld [vmem:[%s5 + $0x1c] sm:$0xf]
      %v531 = vld [vmem:[%s5 + $0x20] sm:$0xf]
      %v532 = vld [vmem:[%s5 + $0x24] sm:$0xf]
      %v533 = vld [vmem:[%s5 + $0x28] sm:$0xf]
      %v534 = vld [vmem:[%s5 + $0x2c] sm:$0xf]
      %v535 = vld [vmem:[%s5 + $0x30] sm:$0xf]
      %v536 = vld [vmem:[%s5 + $0x34] sm:$0xf]
      %v537 = vld [vmem:[%s5 + $0x38] sm:$0xf]
      %v538 = vld [vmem:[%s5 + $0x3c] sm:$0xf]
      %v539 = vld [vmem:[%s6] sm:$0x1]
      %v541 = vperm.slane %v539, 0
      %v559 = vunpack.c.l.b16 %v523
      %v560 = vunpack.c.l.b16 %v524
      %v561 = vunpack.c.l.b16 %v525
      %v562 = vunpack.c.l.b16 %v526
      %v563 = vunpack.c.l.b16 %v527
      %v564 = vunpack.c.l.b16 %v528
      %v565 = vunpack.c.l.b16 %v529
      %v566 = vunpack.c.l.b16 %v530
      %v567 = vunpack.c.l.b16 %v531
      %v568 = vunpack.c.l.b16 %v532
      %v569 = vunpack.c.l.b16 %v533
      %v570 = vunpack.c.l.b16 %v534
      %v571 = vunpack.c.l.b16 %v535
      %v572 = vunpack.c.l.b16 %v536
      %v573 = vunpack.c.l.b16 %v537
      %v574 = vunpack.c.l.b16 %v538
      %v575 = vpack.c.b16 %v560, %v559
      %v576 = vpack.c.b16 %v562, %v561
      %v577 = vpack.c.b16 %v564, %v563
      %v578 = vpack.c.b16 %v566, %v565
      %v579 = vpack.c.b16 %v568, %v567
      %v580 = vpack.c.b16 %v570, %v569
      %v581 = vpack.c.b16 %v572, %v571
      %v582 = vpack.c.b16 %v574, %v573
      %591 = vmatpush.bf16.msra.mxu0 %v582
      %592 = vmatpush.bf16.msra.mxu0 %v581
      %593 = vmatpush.bf16.msra.mxu0 %v580
      %594 = vmatpush.bf16.msra.mxu0 %v579
      %595 = vmatpush.bf16.msra.mxu0 %v578
      %596 = vmatpush.bf16.msra.mxu0 %v577
      %597 = vmatpush.bf16.msra.mxu0 %v576
      %598 = vmatpush.bf16.msra.mxu0 %v575
      %599 = vmatmul.bf16.gmra.mxu0 %v522
      %v600 = vpop.f32.mrf.mxu0
      %v601 = vadd.f32 %v541, %v600
      %v602 = vpop.f32.mrf.mxu0
      %603 = vdwg.mxu0
      %v604 = vmax.f32 %v601, 0.0
      %v605 = vpack.c.bf16 %v604, %v604
      %v606 = vld [vmem:[%s7] sm:$0xf]
      %v607 = vld [vmem:[%s7 + $0x4] sm:$0xf]
      %v608 = vld [vmem:[%s7 + $0x8] sm:$0xf]
      %v609 = vld [vmem:[%s7 + $0xc] sm:$0xf]
      %v610 = vld [vmem:[%s7 + $0x10] sm:$0xf]
      %v611 = vld [vmem:[%s7 + $0x14] sm:$0xf]
      %v612 = vld [vmem:[%s7 + $0x18] sm:$0xf]
      %v613 = vld [vmem:[%s7 + $0x1c] sm:$0xf]
      %v614 = vld [vmem:[%s7 + $0x20] sm:$0xf]
      %v615 = vld [vmem:[%s7 + $0x24] sm:$0xf]
      %v616 = vld [vmem:[%s7 + $0x28] sm:$0xf]
      %v617 = vld [vmem:[%s7 + $0x2c] sm:$0xf]
      %v618 = vld [vmem:[%s7 + $0x30] sm:$0xf]
      %v619 = vld [vmem:[%s7 + $0x34] sm:$0xf]
      %v620 = vld [vmem:[%s7 + $0x38] sm:$0xf]
      %v621 = vld [vmem:[%s7 + $0x3c] sm:$0xf]
      %v622 = vld [vmem:[%s8] sm:$0x1]
      %v624 = vperm.slane %v622, 0
      %v642 = vunpack.c.l.b16 %v606
      %v643 = vunpack.c.l.b16 %v607
      %v644 = vunpack.c.l.b16 %v608
      %v645 = vunpack.c.l.b16 %v609
      %v646 = vunpack.c.l.b16 %v610
      %v647 = vunpack.c.l.b16 %v611
      %v648 = vunpack.c.l.b16 %v612
      %v649 = vunpack.c.l.b16 %v613
      %v650 = vunpack.c.l.b16 %v614
      %v651 = vunpack.c.l.b16 %v615
      %v652 = vunpack.c.l.b16 %v616
      %v653 = vunpack.c.l.b16 %v617
      %v654 = vunpack.c.l.b16 %v618
      %v655 = vunpack.c.l.b16 %v619
      %v656 = vunpack.c.l.b16 %v620
      %v657 = vunpack.c.l.b16 %v621
      %v658 = vpack.c.b16 %v643, %v642
      %v659 = vpack.c.b16 %v645, %v644
      %v660 = vpack.c.b16 %v647, %v646
      %v661 = vpack.c.b16 %v649, %v648
      %v662 = vpack.c.b16 %v651, %v650
      %v663 = vpack.c.b16 %v653, %v652
      %v664 = vpack.c.b16 %v655, %v654
      %v665 = vpack.c.b16 %v657, %v656
      %674 = vmatpush.bf16.msra.mxu0 %v665
      %675 = vmatpush.bf16.msra.mxu0 %v664
      %676 = vmatpush.bf16.msra.mxu0 %v663
      %677 = vmatpush.bf16.msra.mxu0 %v662
      %678 = vmatpush.bf16.msra.mxu0 %v661
      %679 = vmatpush.bf16.msra.mxu0 %v660
      %680 = vmatpush.bf16.msra.mxu0 %v659
      %681 = vmatpush.bf16.msra.mxu0 %v658
      %682 = vmatmul.bf16.gmra.mxu0 %v605
      %v683 = vpop.f32.mrf.mxu0
      %v684 = vadd.f32 %v624, %v683
      %v685 = vpop.f32.mrf.mxu0
      %686 = vdwg.mxu0
      %v687 = vmax.f32 %v684, 0.0
      %v688 = vpack.c.bf16 %v687, %v687
      %v689 = vld [vmem:[%s9] sm:$0xf]
      %v690 = vld [vmem:[%s9 + $0x4] sm:$0xf]
      %v691 = vld [vmem:[%s9 + $0x8] sm:$0xf]
      %v692 = vld [vmem:[%s9 + $0xc] sm:$0xf]
      %v693 = vld [vmem:[%s9 + $0x10] sm:$0xf]
      %v694 = vld [vmem:[%s9 + $0x14] sm:$0xf]
      %v695 = vld [vmem:[%s9 + $0x18] sm:$0xf]
      %v696 = vld [vmem:[%s9 + $0x1c] sm:$0xf]
      %v697 = vld [vmem:[%s9 + $0x20] sm:$0xf]
      %v698 = vld [vmem:[%s9 + $0x24] sm:$0xf]
      %v699 = vld [vmem:[%s9 + $0x28] sm:$0xf]
      %v700 = vld [vmem:[%s9 + $0x2c] sm:$0xf]
      %v701 = vld [vmem:[%s9 + $0x30] sm:$0xf]
      %v702 = vld [vmem:[%s9 + $0x34] sm:$0xf]
      %v703 = vld [vmem:[%s9 + $0x38] sm:$0xf]
      %v704 = vld [vmem:[%s9 + $0x3c] sm:$0xf]
      %v705 = vld [vmem:[%s10] sm:$0x1]
      %v707 = vperm.slane %v705, 0
      %v725 = vunpack.c.l.b16 %v689
      %v726 = vunpack.c.l.b16 %v690
      %v727 = vunpack.c.l.b16 %v691
      %v728 = vunpack.c.l.b16 %v692
      %v729 = vunpack.c.l.b16 %v693
      %v730 = vunpack.c.l.b16 %v694
      %v731 = vunpack.c.l.b16 %v695
      %v732 = vunpack.c.l.b16 %v696
      %v733 = vunpack.c.l.b16 %v697
      %v734 = vunpack.c.l.b16 %v698
      %v735 = vunpack.c.l.b16 %v699
      %v736 = vunpack.c.l.b16 %v700
      %v737 = vunpack.c.l.b16 %v701
      %v738 = vunpack.c.l.b16 %v702
      %v739 = vunpack.c.l.b16 %v703
      %v740 = vunpack.c.l.b16 %v704
      %v741 = vpack.c.b16 %v726, %v725
      %v742 = vpack.c.b16 %v728, %v727
      %v743 = vpack.c.b16 %v730, %v729
      %v744 = vpack.c.b16 %v732, %v731
      %v745 = vpack.c.b16 %v734, %v733
      %v746 = vpack.c.b16 %v736, %v735
      %v747 = vpack.c.b16 %v738, %v737
      %v748 = vpack.c.b16 %v740, %v739
      %757 = vmatpush.bf16.msra.mxu0 %v748
      %758 = vmatpush.bf16.msra.mxu0 %v747
      %759 = vmatpush.bf16.msra.mxu0 %v746
      %760 = vmatpush.bf16.msra.mxu0 %v745
      %761 = vmatpush.bf16.msra.mxu0 %v744
      %762 = vmatpush.bf16.msra.mxu0 %v743
      %763 = vmatpush.bf16.msra.mxu0 %v742
      %764 = vmatpush.bf16.msra.mxu0 %v741
      %765 = vmatmul.bf16.gmra.mxu0 %v688
      %v766 = vpop.f32.mrf.mxu0
      %v767 = vadd.f32 %v707, %v766
      %v768 = vpop.f32.mrf.mxu0
      %769 = vdwg.mxu0
      %v770 = vpack.c.bf16 %v767, %v767
      %771 = vst [vmem:[%s381] sm:$0xf] %v770
      %p772 = scmp.lt.s32.totalorder %s22, 3
      %s773 = scalar_select %p772, %s22, 3
      %s774 = smul.addr %s773, 4
      %s775 = scalar_lea.vmem %s11, %s774
      // Predicated region
      $region65: #{mlp_forward.1} parent=63 // pred_check
        %p776 = pneg %p276
      $region66: #{mlp_forward.1} parent=63 // pred_check_branch
        %778 = sbr.rel (%p776) target = $region68
      $region67: #{mlp_forward.1} parent=63 // pred_region
        _
      $region68: #{mlp_forward.1} parent=63 // pred_fallthru
        _
    $region64: #{mlp_forward.1} parent=5 // pred_fallthru
      _
    %p779 = scmp.le.s32.totalorder 2, %s17
    // Predicated region
    $region69: #{mlp_forward.1} parent=5 // pred_check
      %p780 = pneg %p779
    $region70: #{mlp_forward.1} parent=5 // pred_check_branch
      %782 = sbr.rel (%p780) target = $region72
    $region71: #{mlp_forward.1} parent=5 // pred_region
      %s783 = ssub.s32 %s17, 2
      // Predicated region
      $region73: #{mlp_forward.1} parent=71 // pred_check
        %p784 = pneg %p282
      $region74: #{mlp_forward.1} parent=71 // pred_check_branch
        %786 = sbr.rel (%p784) target = $region76
      $region75: #{mlp_forward.1} parent=71 // pred_region
        %p787 = scmp.lt.s32.totalorder %s23, 3
        %s788 = scalar_select %p787, %s23, 3
        %s789 = smul.addr %s788, 4
        %s790 = scalar_lea.vmem %s11, %s789
      $region76: #{mlp_forward.1} parent=71 // pred_fallthru
        _
    $region72: #{mlp_forward.1} parent=5 // pred_fallthru
      _
  $region6: #{mlp_forward.1} parent=0 // loop_footer
    %s21 = sadd.s32 1, %s17
  $region7: #{mlp_forward.1} parent=0 // loop_footer_branch
    %16 = sbr.rel target = $region3
  $region8: #{mlp_forward.1} parent=0 // loop_exit
    _

</llo_original>
